<compile_context>
chip_gen: v5e
topology: v5e:2x2
jax: 0.10.0
libtpu: 0.0.40
codegen_flags: <defaults>
</compile_context>

<pallas_src>
import functools

import jax
import jax.numpy as jnp
from jax.experimental import pallas as pl
from jax.experimental.pallas import tpu as pltpu


def _largest_divisor_leq(n, cap):
    cap = max(1, min(n, cap))
    for d in range(cap, 0, -1):
        if n % d == 0:
            return d
    return 1


# ----------------------------------------------------------------------------
# Kernel 1: ConvTranspose2d with kernel == stride (no bias).
#   For output-row phase kh:  out_row(b,h,kh)[w*Ku*C + kw*C + c]
#       = sum_ci x[b,h,w,ci] * w_phases[kh][ci, kw*C + c]
#   Output array (B*H, Ku, W, Ku*C) has the same row-major layout as NHWC
#   (B, H*Ku, W*Ku, C), so the pixel shuffle is free in the wrapper.
# ----------------------------------------------------------------------------
def _upsample_kernel(x_ref, w_ref, o_ref, *, tr, w_in, kc):
    y = jnp.dot(x_ref[...], w_ref[0], preferred_element_type=jnp.float32)  # (tr*w_in, kc)
    o_ref[...] = y.reshape(tr, 1, w_in, kc).astype(o_ref.dtype)


def transp_conv_pixelshuffle(x_nhwc, w_phases, out_dtype=jnp.float32):
    B, H, W, Cin = x_nhwc.shape
    Ku = w_phases.shape[0]
    KC = w_phases.shape[2]
    Cout = KC // Ku
    assert W % 8 == 0, "low-res width must be a multiple of 8 (sublane tile)"

    BH = B * H
    # whole low-res rows per step, ~512 pixels of (pixels, Cin) per matmul block
    TR = _largest_divisor_leq(BH, max(1, 512 // W))
    grid = (BH // TR, Ku)

    x_flat = x_nhwc.reshape(BH * W, Cin)  # free row-major collapse
    kern = functools.partial(_upsample_kernel, tr=TR, w_in=W, kc=KC)
    y4 = pl.pallas_call(
        kern,
        out_shape=jax.ShapeDtypeStruct((BH, Ku, W, KC), out_dtype),
        grid=grid,
        in_specs=[
            pl.BlockSpec((TR * W, Cin), lambda i, kh: (i, 0)),
            pl.BlockSpec((1, Cin, KC), lambda i, kh: (kh, 0, 0)),
        ],
        out_specs=pl.BlockSpec((TR, 1, W, KC), lambda i, kh: (i, kh, 0, 0)),
        compiler_params=pltpu.CompilerParams(
            dimension_semantics=("parallel", "arbitrary"),
            vmem_limit_bytes=48 * 1024 * 1024,
        ),
    )(x_flat, w_phases)
    # same linear layout as NHWC upsampled tensor -> free reshape
    return y4.reshape(B, H * Ku, W * Ku, Cout)


# ----------------------------------------------------------------------------
# Kernel 2: fused  (3x3 conv on concat -> IN -> LeakyReLU) -> (3x3 conv -> IN -> LeakyReLU)
# One sample per grid step.  concat / pad / intermediate never touch HBM.
# ----------------------------------------------------------------------------
def _fused_double_conv_kernel(y_ref, s_ref, w1y_ref, w1s_ref, w2_ref, o_ref,
                              rowbuf, *, h2, w2, k, c, eps, slope):
    pad = (k - 1) // 2
    hw = h2 * w2

    # rowbuf[kw, i, w, :] == zero-padded input row i, shifted left by kw columns.
    # The halo regions are never written by build_rows, so zero once per step.
    rowbuf[...] = jnp.zeros_like(rowbuf)

    def build_rows(src):  # src: (h2, w2, c) value
        src = src.astype(rowbuf.dtype)
        for kw in range(k):
            d_lo = max(0, pad - kw)
            d_hi = min(w2, w2 + pad - kw)
            s_lo = max(0, kw - pad)
            s_hi = s_lo + (d_hi - d_lo)
            rowbuf[kw, pad:pad + h2, d_lo:d_hi, :] = src[:, s_lo:s_hi, :]

    def conv_taps(wref):  # 3x3 conv taps from current rowbuf; weights (k*k, c, c)
        acc = jnp.zeros((hw, c), jnp.float32)
        for kh in range(k):
            for kw in range(k):
                patch = rowbuf[kw, kh:kh + h2]            # (h2, w2, c), aligned load
                acc = acc + jnp.dot(patch.reshape(hw, c), wref[kh * k + kw],
                                    preferred_element_type=jnp.float32)
        return acc

    def inorm_lrelu(acc):  # InstanceNorm (biased var, single pass) + LeakyReLU, f32
        inv_n = 1.0 / hw
        mean = jnp.sum(acc, axis=0, keepdims=True) * inv_n
        mean_sq = jnp.sum(acc * acc, axis=0, keepdims=True) * inv_n
        var = mean_sq - mean * mean
        yn = (acc - mean) * jax.lax.rsqrt(var + eps)
        return jnp.where(yn >= 0, yn, slope * yn)

    # conv1 over concat([y_up, skip]) without materializing the concat
    build_rows(y_ref[0])
    acc1 = conv_taps(w1y_ref)
    build_rows(s_ref[0])
    acc1 = acc1 + conv_taps(w1s_ref)
    z1 = inorm_lrelu(acc1)

    # conv2 consumes z1 straight from VMEM (no HBM round trip between the stages)
    build_rows(z1.reshape(h2, w2, c))
    z2 = inorm_lrelu(conv_taps(w2_ref))

    o_ref[...] = z2.reshape(1, h2, w2, c).astype(o_ref.dtype)


def fused_double_conv_in_lrelu(y_up, skip, w1y, w1s, w2, *, eps=1e-5, slope=0.01,
                               out_dtype=jnp.float32):
    B, H2, W2, C = y_up.shape
    KK = w1y.shape[0]
    K = int(round(KK ** 0.5))
    assert K * K == KK and K % 2 == 1
    assert skip.shape == (B, H2, W2, C)
    assert W2 % 8 == 0, "upsampled width must be a multiple of 8 (sublane tile)"
    Hp = H2 + K - 1

    kern = functools.partial(_fused_double_conv_kernel,
                             h2=H2, w2=W2, k=K, c=C, eps=eps, slope=slope)
    return pl.pallas_call(
        kern,
        out_shape=jax.ShapeDtypeStruct((B, H2, W2, C), out_dtype),
        grid=(B,),
        in_specs=[
            pl.BlockSpec((1, H2, W2, C), lambda b: (b, 0, 0, 0)),
            pl.BlockSpec((1, H2, W2, C), lambda b: (b, 0, 0, 0)),
            pl.BlockSpec((KK, C, C), lambda b: (0, 0, 0)),
            pl.BlockSpec((KK, C, C), lambda b: (0, 0, 0)),
            pl.BlockSpec((KK, C, C), lambda b: (0, 0, 0)),
        ],
        out_specs=pl.BlockSpec((1, H2, W2, C), lambda b: (b, 0, 0, 0)),
        scratch_shapes=[pltpu.VMEM((K, Hp, W2, C), y_up.dtype)],
        compiler_params=pltpu.CompilerParams(
            dimension_semantics=("parallel",),
            vmem_limit_bytes=48 * 1024 * 1024,
        ),
    )(y_up, skip, w1y, w1s, w2)


# ----------------------------------------------------------------------------
# Module wrapper
# ----------------------------------------------------------------------------
class UnetrUpBlockPallas:
    def __init__(self, key, spatial_dims, in_channels, out_channels, kernel_size,
                 upsample_kernel_size, norm_name="instance", res_block=False,
                 has_outCNN=True, compute_dtype=jnp.float32):
        assert spatial_dims == 2, "this kernel implements the 2D case"
        assert not res_block  # TODO(synk): UnetResBlock (residual 1x1-conv path) not implemented
        assert norm_name == "instance"
        self.has_outCNN = has_outCNN
        self.out_channels = out_channels
        self.up_k = upsample_kernel_size
        self.k = kernel_size
        self.compute_dtype = compute_dtype

        k1, k2, k3 = jax.random.split(key, 3)
        C, Ku, K = out_channels, upsample_kernel_size, kernel_size

        # ConvTranspose2d weight, logical layout (Cin, kH, kW, Cout)
        # (== torch (Cin, Cout, kH, kW) with the Cout axis moved last).
        w_up = 0.1 * jax.random.normal(k1, (in_channels, Ku, Ku, C), jnp.float32)
        self._w_up_raw = w_up
        # pre-arranged per output-row phase kh: (Ku, Cin, Ku*Cout)
        self.w_up_phases = (jnp.transpose(w_up, (1, 0, 2, 3))
                            .reshape(Ku, in_channels, Ku * C)
                            .astype(compute_dtype))

        if has_outCNN:
            # UnetBasicBlock convs (HWIO, bias=False).  conv1 is split into the weight
            # halves applied to the upsampled tensor / skip so the concat never exists.
            w1 = 0.1 * jax.random.normal(k2, (K, K, 2 * C, C), jnp.float32)
            w2 = 0.1 * jax.random.normal(k3, (K, K, C, C), jnp.float32)
            self._w1_raw, self._w2_raw = w1, w2
            self.w1y = w1[:, :, :C, :].reshape(K * K, C, C).astype(compute_dtype)
            self.w1s = w1[:, :, C:, :].reshape(K * K, C, C).astype(compute_dtype)
            self.w2 = w2.reshape(K * K, C, C).astype(compute_dtype)

    def __call__(self, inp_nchw, skip_nchw):
        # NCHW <-> NHWC transposes stay at the module boundary only because the reference
        # interface is NCHW; a fully NHWC decoder would drop them entirely.
        x = jnp.transpose(inp_nchw, (0, 2, 3, 1)).astype(self.compute_dtype)
        skip = jnp.transpose(skip_nchw, (0, 2, 3, 1)).astype(self.compute_dtype)

        # kernel 1: tiled transposed conv; output layout already == upsampled NHWC
        y_up = transp_conv_pixelshuffle(x, self.w_up_phases, out_dtype=self.compute_dtype)

        if not self.has_outCNN:
            out = jnp.concatenate([y_up, skip], axis=-1).astype(jnp.float32)
            return jnp.transpose(out, (0, 3, 1, 2))

        # kernel 2: fused concat-free (conv3x3 + InstanceNorm + LeakyReLU) x 2
        out = fused_double_conv_in_lrelu(y_up, skip, self.w1y, self.w1s, self.w2,
                                         out_dtype=jnp.float32)
        return jnp.transpose(out, (0, 3, 1, 2))


# ----------------------------------------------------------------------------
# Pure-JAX reference (mirrors the PyTorch module) for a correctness check.
# ----------------------------------------------------------------------------
def reference_forward(block, inp_nchw, skip_nchw, eps=1e-5, slope=0.01):
    hi = jax.lax.Precision.HIGHEST
    x = jnp.asarray(inp_nchw, jnp.float32)
    skip = jnp.transpose(skip_nchw, (0, 2, 3, 1)).astype(jnp.float32)
    Ku, C = block.up_k, block.out_channels
    B, Cin, H, W = x.shape

    # ConvTranspose2d, kernel==stride: out[b, h*Ku+i, w*Ku+j, o] = sum_c x[b,c,h,w]*w[c,i,j,o]
    y = jnp.einsum('bchw,cijo->bhiwjo', x, block._w_up_raw, precision=hi)
    y = y.reshape(B, H * Ku, W * Ku, C)
    out = jnp.concatenate([y, skip], axis=-1)

    if block.has_outCNN:
        def conv_in_lrelu(t, w):
            t = jax.lax.conv_general_dilated(
                t, w, window_strides=(1, 1), padding=[(1, 1), (1, 1)],
                dimension_numbers=('NHWC', 'HWIO', 'NHWC'), precision=hi)
            mean = jnp.mean(t, axis=(1, 2), keepdims=True)
            var = jnp.mean((t - mean) ** 2, axis=(1, 2), keepdims=True)
            t = (t - mean) * jax.lax.rsqrt(var + eps)
            return jnp.where(t >= 0, t, slope * t)
        out = conv_in_lrelu(out, block._w1_raw)
        out = conv_in_lrelu(out, block._w2_raw)
    return jnp.transpose(out, (0, 3, 1, 2))


if __name__ == "__main__":
    key = jax.random.PRNGKey(0)
    kb, ki, ks = jax.random.split(key, 3)

    B, Cin, Cout = 2, 8, 4
    H = W = 8
    up_k = 2

    block = UnetrUpBlockPallas(
        kb, spatial_dims=2, in_channels=Cin, out_channels=Cout,
        kernel_size=3, upsample_kernel_size=up_k, norm_name="instance",
        res_block=False, has_outCNN=True)

    inp = jax.random.normal(ki, (B, Cin, H, W), jnp.float32)                   # low-res feature
    skip = jax.random.normal(ks, (B, Cout, H * up_k, W * up_k), jnp.float32)   # encoder skip

    out = jax.block_until_ready(block(inp, skip))
    assert out.shape == (B, Cout, H * up_k, W * up_k), out.shape
    assert bool(jnp.isfinite(out).all())

    ref = reference_forward(block, inp, skip)
    max_err = float(jnp.max(jnp.abs(out - ref)))
    assert max_err < 5e-2, f"mismatch vs pure-JAX reference: {max_err}"

    print("KERNEL_OK")
</pallas_src>

<mosaic_0001>
module attributes {stable_mosaic.version = 11 : i64} {
  func.func @_upsample_kernel(%arg0: i32, %arg1: i32, %arg2: memref<128x8xf32, #tpu.memory_space<vmem>>, %arg3: memref<1x8x8xf32, #tpu.memory_space<vmem>>, %arg4: memref<16x1x8x8xf32, #tpu.memory_space<vmem>>) attributes {dimension_semantics = [#tpu.dimension_semantics<parallel>, #tpu.dimension_semantics<arbitrary>], iteration_bounds = array<i64: 1, 2>, scalar_prefetch = 0 : i64, scratch_operands = 0 : i64, tpu.core_type = #tpu.core_type<tc>, window_params = [{transform_indices = @transform_0, window_bounds = array<i64: 128, 8>}, {transform_indices = @transform_1, window_bounds = array<i64: 1, 8, 8>}, {transform_indices = @transform_2, window_bounds = array<i64: 16, 1, 8, 8>}]} {
    %c0 = arith.constant 0 : index
    %c0_0 = arith.constant 0 : index
    %0 = vector.load %arg2[%c0, %c0_0] : memref<128x8xf32, #tpu.memory_space<vmem>>, vector<128x8xf32>
    %c0_1 = arith.constant 0 : index
    %c0_2 = arith.constant 0 : index
    %c0_3 = arith.constant 0 : index
    %1 = vector.load %arg3[%c0_1, %c0_2, %c0_3] : memref<1x8x8xf32, #tpu.memory_space<vmem>>, vector<1x8x8xf32>
    %2 = vector.shape_cast %1 : vector<1x8x8xf32> to vector<8x8xf32>
    %cst = arith.constant dense<0.000000e+00> : vector<128x8xf32>
    %3 = tpu.matmul %0, %2, %cst {dimension_numbers = #tpu.dot_dimension_numbers<[1], [0], [0], [1], [0, 0, 1, 1], [], []>} : vector<128x8xf32>, vector<8x8xf32>, vector<128x8xf32> -> vector<128x8xf32>
    %4 = vector.shape_cast %3 : vector<128x8xf32> to vector<16x1x8x8xf32>
    %c0_4 = arith.constant 0 : index
    %c0_5 = arith.constant 0 : index
    %c0_6 = arith.constant 0 : index
    %c0_7 = arith.constant 0 : index
    %5 = vector.load %arg4[%c0_4, %c0_5, %c0_6, %c0_7] : memref<16x1x8x8xf32, #tpu.memory_space<vmem>>, vector<16x1x8x8xf32>
    tpu.vector_store %arg4[%c0_4, %c0_5, %c0_6, %c0_7], %4 {strides = array<i32>} : memref<16x1x8x8xf32, #tpu.memory_space<vmem>>, vector<16x1x8x8xf32>,
    return
  }
  func.func @transform_0(%arg0: i32, %arg1: i32) -> (i32, i32) {
    %c0_i32 = arith.constant 0 : i32
    %c0_i32_0 = arith.constant 0 : i32
    return %arg0, %c0_i32 : i32, i32
  }
  func.func @transform_1(%arg0: i32, %arg1: i32) -> (i32, i32, i32) {
    %c0_i32 = arith.constant 0 : i32
    %c0_i32_0 = arith.constant 0 : i32
    %c0_i32_1 = arith.constant 0 : i32
    return %arg1, %c0_i32, %c0_i32_0 : i32, i32, i32
  }
  func.func @transform_2(%arg0: i32, %arg1: i32) -> (i32, i32, i32, i32) {
    %c0_i32 = arith.constant 0 : i32
    %c0_i32_0 = arith.constant 0 : i32
    %c0_i32_1 = arith.constant 0 : i32
    return %arg0, %arg1, %c0_i32, %c0_i32_0 : i32, i32, i32, i32
  }
}

</mosaic_0001>

<llo_original>
// kernel: tpu_custom_call.1
$region0: #{tpu_custom_call.1}
  #allocation0 [shape = 'u32[]', space=smem, size = 0x4, offset = 0x4, fixed_abs, tag = 'smem constant byte address 0x4 - core index']
  #allocation1 [shape = 'u32[72,128]{1,0:T(1,128)}', space=vmem, size = 0x9000, scoped, tag = 'internal scratch']
  %s0 = inlined_call_operand.vmem [shape: f32[128,8], index: 0, kind: input, shape index: {}]
  %s1 = inlined_call_operand.vmem [shape: f32[2,8,8], index: 1, kind: input, shape index: {}]
  %s2 = inlined_call_operand.vmem [shape: f32[16,2,8,8], index: 2, kind: output, shape index: {}]
  %s3 = sld [smem:[#allocation0]]
  $region75: #{tpu_custom_call.1} parent=0
    _
  %s5 = ssub.s32 1, %s3
  %s6 = scalar_select 0, %s5, %s3
  $region1: #{tpu_custom_call.1} parent=0
    #allocation2 [shape = 'u8[131072]{0}', space=vmem, size = 0x20000, scoped, tag = 'output window, operand 0']
    loop: start=0, step=1, limit=4
    $region2: #{tpu_custom_call.1} parent=1 // loop_pre_header
      _
    $region3: #{tpu_custom_call.1} parent=1 // loop_header
      %s8 = sphi 0, %s12
      %p9 = scmp.ge.s32.totalorder %s8, 4
      %s15 = sphi 0, %s27
      %s16 = sphi 0, %s23
      %s17 = sphi 0, %s15
      %s18 = sphi 0, %s16
      %s19 = sphi 0, %s17
      %s20 = sphi 0, %s18
      %s30 = sphi 0, %s32
      %s33 = sphi 0, %s30
      %s34 = sphi 0, %s33
      %s50 = sphi 0, %s34
      %s56 = sphi 0, %s58
      %s59 = sphi 0, %s56
      %s60 = sphi 0, %s59
      %s76 = sphi 0, %s60
      %s84 = sphi 0, %s86
      %s87 = sphi 0, %s84
      %s88 = sphi 0, %s87
      %s104 = sphi 0, %s88
    $region4: #{tpu_custom_call.1} parent=1 // loop_header_branch
      %11 = sbr.rel (%p9) target = $region8
    $region5: #{tpu_custom_call.1} parent=1 // loop_body
      %s13 = ssub.s32 %s8, 1
      %s14 = ssub.s32 %s8, 2
      %s21 = sadd.s32 1, %s16
      %p22 = scmp.ge.s32.totalorder %s21, 2
      %s23 = scalar_select %p22, 0, %s21
      %s24 = sadd.s32 1, %s15
      %s25 = scalar_select %p22, %s24, %s15
      %p26 = scmp.ge.s32.totalorder %s25, 1
      %s27 = scalar_select %p26, 0, %s25
      %s28 = ssub.s32 %s15, %s27
      %p29 = scmp.eq.s32.totalorder %s28, 0
      %s31 = sadd.s32 %s30, 1
      %s32 = scalar_select %p29, %s30, %s31
      %p35 = pneg %p29
      %p36 = scmp.eq.s32.totalorder %s8, 1
      %p37 = por %p35, %p36
      %p38 = scmp.ne.s32.totalorder %s30, %s33
      %p39 = scmp.eq.s32.totalorder %s8, 0
      %p40 = por %p38, %p39
      %p41 = scmp.ne.s32.totalorder %s30, %s33
      %p42 = scmp.eq.s32.totalorder %s13, 1
      %p43 = por %p41, %p42
      %p44 = scmp.ne.s32.totalorder %s33, %s34
      %p45 = scmp.eq.s32.totalorder %s13, 0
      %p46 = por %p44, %p45
      %p47 = scmp.ne.s32.totalorder %s33, %s34
      %p48 = scmp.eq.s32.totalorder %s14, 1
      %p49 = por %p47, %p48
      %p51 = scmp.ne.s32.totalorder %s34, %s50
      %p52 = scmp.eq.s32.totalorder %s14, 0
      %p53 = por %p51, %p52
      %s54 = ssub.s32 %s16, %s23
      %p55 = scmp.eq.s32.totalorder %s54, 0
      %s57 = sadd.s32 %s56, 1
      %s58 = scalar_select %p55, %s56, %s57
      %p61 = pneg %p55
      %p62 = scmp.eq.s32.totalorder %s8, 1
      %p63 = por %p61, %p62
      %p64 = scmp.ne.s32.totalorder %s56, %s59
      %p65 = scmp.eq.s32.totalorder %s8, 0
      %p66 = por %p64, %p65
      %p67 = scmp.ne.s32.totalorder %s56, %s59
      %p68 = scmp.eq.s32.totalorder %s13, 1
      %p69 = por %p67, %p68
      %p70 = scmp.ne.s32.totalorder %s59, %s60
      %p71 = scmp.eq.s32.totalorder %s13, 0
      %p72 = por %p70, %p71
      %p73 = scmp.ne.s32.totalorder %s59, %s60
      %p74 = scmp.eq.s32.totalorder %s14, 1
      %p75 = por %p73, %p74
      %p77 = scmp.ne.s32.totalorder %s60, %s76
      %p78 = scmp.eq.s32.totalorder %s14, 0
      %p79 = por %p77, %p78
      %s80 = ssub.s32 %s15, %s27
      %s81 = ssub.s32 %s16, %s23
      %s82 = sor.u32 %s80, %s81
      %p83 = scmp.eq.s32.totalorder %s82, 0
      %s85 = sadd.s32 %s84, 1
      %s86 = scalar_select %p83, %s84, %s85
      %p89 = pneg %p83
      %p90 = scmp.eq.s32.totalorder %s8, 1
      %p91 = por %p89, %p90
      %p92 = scmp.ne.s32.totalorder %s84, %s87
      %p93 = scmp.eq.s32.totalorder %s8, 0
      %p94 = por %p92, %p93
      %p95 = scmp.ne.s32.totalorder %s84, %s87
      %p96 = scmp.eq.s32.totalorder %s13, 1
      %p97 = por %p95, %p96
      %p98 = scmp.ne.s32.totalorder %s87, %s88
      %p99 = scmp.eq.s32.totalorder %s13, 0
      %p100 = por %p98, %p99
      %p101 = scmp.ne.s32.totalorder %s87, %s88
      %p102 = scmp.eq.s32.totalorder %s14, 1
      %p103 = por %p101, %p102
      %p105 = scmp.ne.s32.totalorder %s88, %s104
      %p106 = scmp.eq.s32.totalorder %s14, 0
      %p107 = por %p105, %p106
      %p108 = scmp.le.s32.totalorder 1, %s8
      %p109 = scmp.lt.s32.totalorder %s8, 3
      %p110 = pnand %p108, %p109
      %p111 = pneg %p110
      // Predicated region
      $region9: #{tpu_custom_call.1} parent=5 // pred_check
        _
      $region10: #{tpu_custom_call.1} parent=5 // pred_check_branch
        %113 = sbr.rel (%p110) target = $region12
      $region11: #{tpu_custom_call.1} parent=5 // pred_region
        %s114 = ssub.s32 %s8, 1
        // Predicated region
        $region13: #{tpu_custom_call.1} parent=11 // pred_check
          %p115 = pneg %p46
        $region14: #{tpu_custom_call.1} parent=11 // pred_check_branch
          %117 = sbr.rel (%p115) target = $region16
        $region15: #{tpu_custom_call.1} parent=11 // pred_region
          %s118 = smul.u32 16, %s17
          %p119 = scmp.lt.s32.totalorder %s118, 15
          %s120 = scalar_select %p119, %s118, 15
          %s121 = smul.addr %s120, 8
          %s122 = scalar_lea.vmem %s0, %s121
          %s123 = smul.u32 16, %s17
        $region16: #{tpu_custom_call.1} parent=11 // pred_fallthru
          _
      $region12: #{tpu_custom_call.1} parent=5 // pred_fallthru
        _
      %p124 = scmp.lt.s32.totalorder %s8, 2
      // Predicated region
      $region17: #{tpu_custom_call.1} parent=5 // pred_check
        %p125 = pneg %p124
      $region18: #{tpu_custom_call.1} parent=5 // pred_check_branch
        %127 = sbr.rel (%p125) target = $region20
      $region19: #{tpu_custom_call.1} parent=5 // pred_region
        // Predicated region
        $region21: #{tpu_custom_call.1} parent=19 // pred_check
          %p128 = pneg %p66
        $region22: #{tpu_custom_call.1} parent=19 // pred_check_branch
          %130 = sbr.rel (%p128) target = $region24
        $region23: #{tpu_custom_call.1} parent=19 // pred_region
          %p131 = scmp.lt.s32.totalorder %s16, 1
          %s132 = scalar_select %p131, %s16, 1
          %s133 = smul.addr %s132, 8
          %s134 = scalar_lea.vmem %s1, %s133
        $region24: #{tpu_custom_call.1} parent=19 // pred_fallthru
          _
      $region20: #{tpu_custom_call.1} parent=5 // pred_fallthru
        _
      %p135 = scmp.le.s32.totalorder 1, %s8
      %p136 = scmp.lt.s32.totalorder %s8, 3
      %p137 = pnand %p135, %p136
      %p138 = pneg %p137
      // Predicated region
      $region25: #{tpu_custom_call.1} parent=5 // pred_check
        _
      $region26: #{tpu_custom_call.1} parent=5 // pred_check_branch
        %140 = sbr.rel (%p137) target = $region28
      $region27: #{tpu_custom_call.1} parent=5 // pred_region
        %s141 = ssub.s32 %s8, 1
        %s142 = smul.u32 16, %s17
        %p143 = scmp.lt.s32.totalorder %s142, 15
        %s144 = scalar_select %p143, %s142, 15
        %s145 = smul.addr %s144, 8
        %s146 = scalar_lea.vmem %s0, %s145
        %p147 = pneg %p46
        %p148 = pneg %p43
        %p149 = scmp.lt.s32.totalorder %s18, 1
        %s150 = scalar_select %p149, %s18, 1
        %s151 = smul.addr %s150, 8
        %s152 = scalar_lea.vmem %s1, %s151
        %p153 = pneg %p72
        %p154 = pneg %p69
        %p155 = pneg %p100
        %p156 = pneg %p97
        %s157 = sand.u32 %s87, 1
        %s158 = sand.u32 %s87, 1
        %s159 = smul.addr %s158, 128
        %s160 = scalar_lea.vmem [#allocation2], %s159
        %s161 = smul.u32 16, %s17
        %p162 = scmp.lt.s32.totalorder %s161, 15
        %s163 = scalar_select %p162, %s161, 15
        %s164 = smul.addr %s163, 8
        %s165 = scalar_lea.vmem %s0, %s164
        %s166 = smul.u32 16, %s17
        %p167 = scmp.lt.s32.totalorder %s18, 1
        %s168 = scalar_select %p167, %s18, 1
        %s169 = smul.addr %s168, 8
        %s170 = scalar_lea.vmem %s1, %s169
        %s171 = smul.u32 16, %s17
        %v172 = vld [vmem:[%s165] sm:$0xff]
        %v173 = vld [vmem:[%s165 + $0x8] sm:$0xff]
        %v174 = vld [vmem:[%s165 + $0x10] sm:$0xff]
        %v175 = vld [vmem:[%s165 + $0x18] sm:$0xff]
        %v176 = vld [vmem:[%s165 + $0x20] sm:$0xff]
        %v177 = vld [vmem:[%s165 + $0x28] sm:$0xff]
        %v178 = vld [vmem:[%s165 + $0x30] sm:$0xff]
        %v179 = vld [vmem:[%s165 + $0x38] sm:$0xff]
        %v180 = vld [vmem:[%s165 + $0x40] sm:$0xff]
        %v181 = vld [vmem:[%s165 + $0x48] sm:$0xff]
        %v182 = vld [vmem:[%s165 + $0x50] sm:$0xff]
        %v183 = vld [vmem:[%s165 + $0x58] sm:$0xff]
        %v184 = vld [vmem:[%s165 + $0x60] sm:$0xff]
        %v185 = vld [vmem:[%s165 + $0x68] sm:$0xff]
        %v186 = vld [vmem:[%s165 + $0x70] sm:$0xff]
        %v187 = vld [vmem:[%s165 + $0x78] sm:$0xff]
        %v188 = vld [vmem:[%s170] sm:$0xff]
        %vm189 = vcmask 64512
        %v191 = vsel %vm189, %v172, 0
        %v194 = vsel %vm189, %v173, 0
        %v197 = vsel %vm189, %v174, 0
        %v200 = vsel %vm189, %v175, 0
        %v203 = vsel %vm189, %v176, 0
        %v206 = vsel %vm189, %v177, 0
        %v209 = vsel %vm189, %v178, 0
        %v212 = vsel %vm189, %v179, 0
        %v215 = vsel %vm189, %v180, 0
        %v218 = vsel %vm189, %v181, 0
        %v221 = vsel %vm189, %v182, 0
        %v224 = vsel %vm189, %v183, 0
        %v227 = vsel %vm189, %v184, 0
        %v230 = vsel %vm189, %v185, 0
        %v233 = vsel %vm189, %v186, 0
        %v236 = vsel %vm189, %v187, 0
        %238 = vmatpush.msra.mxu0 0.0
        %239 = vmatpush.msra.mxu0 0.0
        %240 = vmatpush.msra.mxu0 0.0
        %241 = vmatpush.msra.mxu0 0.0
        %242 = vmatpush.msra.mxu0 0.0
        %243 = vmatpush.msra.mxu0 0.0
        %244 = vmatpush.msra.mxu0 0.0
        %245 = vmatpush.msra.mxu0 0.0
        %246 = vmatpush.msra.mxu0 0.0
        %247 = vmatpush.msra.mxu0 0.0
        %248 = vmatpush.msra.mxu0 0.0
        %249 = vmatpush.msra.mxu0 0.0
        %250 = vmatpush.msra.mxu0 0.0
        %251 = vmatpush.msra.mxu0 0.0
        %252 = vmatpush.msra.mxu0 0.0
        %253 = vmatpush.msra.mxu0 %v188
        %254 = vmatmul.f32.gmra.mxu0 %v191
        %v255 = vpop.f32.mrf.mxu0
        %v256 = vadd.f32 0.0, %v255
        %257 = vmatmul.f32.gmra.mxu0 %v194
        %v258 = vpop.f32.mrf.mxu0
        %v259 = vadd.f32 0.0, %v258
        %260 = vmatmul.f32.gmra.mxu0 %v197
        %v261 = vpop.f32.mrf.mxu0
        %v262 = vadd.f32 0.0, %v261
        %263 = vmatmul.f32.gmra.mxu0 %v200
        %v264 = vpop.f32.mrf.mxu0
        %v265 = vadd.f32 0.0, %v264
        %266 = vmatmul.f32.gmra.mxu0 %v203
        %v267 = vpop.f32.mrf.mxu0
        %v268 = vadd.f32 0.0, %v267
        %269 = vmatmul.f32.gmra.mxu0 %v206
        %v270 = vpop.f32.mrf.mxu0
        %v271 = vadd.f32 0.0, %v270
        %272 = vmatmul.f32.gmra.mxu0 %v209
        %v273 = vpop.f32.mrf.mxu0
        %v274 = vadd.f32 0.0, %v273
        %275 = vmatmul.f32.gmra.mxu0 %v212
        %v276 = vpop.f32.mrf.mxu0
        %v277 = vadd.f32 0.0, %v276
        %278 = vmatmul.f32.gmra.mxu0 %v215
        %v279 = vpop.f32.mrf.mxu0
        %v280 = vadd.f32 0.0, %v279
        %281 = vmatmul.f32.gmra.mxu0 %v218
        %v282 = vpop.f32.mrf.mxu0
        %v283 = vadd.f32 0.0, %v282
        %284 = vmatmul.f32.gmra.mxu0 %v221
        %v285 = vpop.f32.mrf.mxu0
        %v286 = vadd.f32 0.0, %v285
        %287 = vmatmul.f32.gmra.mxu0 %v224
        %v288 = vpop.f32.mrf.mxu0
        %v289 = vadd.f32 0.0, %v288
        %290 = vmatmul.f32.gmra.mxu0 %v227
        %v291 = vpop.f32.mrf.mxu0
        %v292 = vadd.f32 0.0, %v291
        %293 = vmatmul.f32.gmra.mxu0 %v230
        %v294 = vpop.f32.mrf.mxu0
        %v295 = vadd.f32 0.0, %v294
        %296 = vmatmul.f32.gmra.mxu0 %v233
        %v297 = vpop.f32.mrf.mxu0
        %v298 = vadd.f32 0.0, %v297
        %299 = vmatmul.f32.gmra.mxu0 %v236
        %v300 = vpop.f32.mrf.mxu0
        %v301 = vadd.f32 0.0, %v300
        %302 = vdwg.mxu0
        %303 = vst.msk [vmem:[%s160] sm:$0xff] %vm189, %v256
        %304 = vst.msk [vmem:[%s160 + $0x8] sm:$0xff] %vm189, %v259
        %305 = vst.msk [vmem:[%s160 + $0x10] sm:$0xff] %vm189, %v262
        %306 = vst.msk [vmem:[%s160 + $0x18] sm:$0xff] %vm189, %v265
        %307 = vst.msk [vmem:[%s160 + $0x20] sm:$0xff] %vm189, %v268
        %308 = vst.msk [vmem:[%s160 + $0x28] sm:$0xff] %vm189, %v271
        %309 = vst.msk [vmem:[%s160 + $0x30] sm:$0xff] %vm189, %v274
        %310 = vst.msk [vmem:[%s160 + $0x38] sm:$0xff] %vm189, %v277
        %311 = vst.msk [vmem:[%s160 + $0x40] sm:$0xff] %vm189, %v280
        %312 = vst.msk [vmem:[%s160 + $0x48] sm:$0xff] %vm189, %v283
        %313 = vst.msk [vmem:[%s160 + $0x50] sm:$0xff] %vm189, %v286
        %314 = vst.msk [vmem:[%s160 + $0x58] sm:$0xff] %vm189, %v289
        %315 = vst.msk [vmem:[%s160 + $0x60] sm:$0xff] %vm189, %v292
        %316 = vst.msk [vmem:[%s160 + $0x68] sm:$0xff] %vm189, %v295
        %317 = vst.msk [vmem:[%s160 + $0x70] sm:$0xff] %vm189, %v298
        %318 = vst.msk [vmem:[%s160 + $0x78] sm:$0xff] %vm189, %v301
        %s319 = sand.u32 %s87, 1
        %s320 = sand.u32 %s87, 1
        %s321 = smul.addr %s320, 128
        %s322 = scalar_lea.vmem [#allocation2], %s321
        // Predicated region
        $region29: #{tpu_custom_call.1} parent=27 // pred_check
          %p323 = pneg %p97
        $region30: #{tpu_custom_call.1} parent=27 // pred_check_branch
          %325 = sbr.rel (%p323) target = $region32
        $region31: #{tpu_custom_call.1} parent=27 // pred_region
          %s326 = smul.u32 16, %s17
          %s327 = smul.addr %s326, 2
          %s328 = sadd.s32 %s18, %s327
          %s329 = smul.addr %s328, 8
          %s330 = scalar_lea.vmem %s2, %s329
          // Predicated region
          $region33: #{tpu_custom_call.1} parent=31 // pred_check
            _
          $region34: #{tpu_custom_call.1} parent=31 // pred_check_branch
            %332 = sbr.rel (0) target = $region36
          $region35: #{tpu_custom_call.1} parent=31 // pred_region
            // Predicated region
            $region37: #{tpu_custom_call.1} parent=35 // pred_check
              _
            $region38: #{tpu_custom_call.1} parent=35 // pred_check_branch
              %334 = sbr.rel (0) target = $region40
            $region39: #{tpu_custom_call.1} parent=35 // pred_region
              // Predicated region
              $region52: #{tpu_custom_call.1} parent=39 // pred_check
                _
              $region53: #{tpu_custom_call.1} parent=39 // pred_check_branch
                %380 = sbr.rel (0) target = $region55
              $region54: #{tpu_custom_call.1} parent=39 // pred_region
                loop: start=0, step=1, limit=1
                $region56: #{tpu_custom_call.1} parent=54 // loop_pre_header
                  _
                $region57: #{tpu_custom_call.1} parent=54 // loop_header
                  %s382 = sphi 0, %s386
                  %p383 = scmp.ge.s32.totalorder %s382, 1
                  %s387 = sphi %s322, %s322
                  %s388 = sphi %s330, %s330
                $region58: #{tpu_custom_call.1} parent=54 // loop_header_branch
                  %385 = sbr.rel (%p383) target = $region62
                $region59: #{tpu_custom_call.1} parent=54 // loop_body
                  %v389 = vld [vmem:[%s387] sm:$0xff]
                  %390 = vst [vmem:[%s388] sm:$0xff] %v389
                  %v391 = vld [vmem:[%s387 + $0x8] sm:$0xff]
                  %392 = vst [vmem:[%s388 + $0x10] sm:$0xff] %v391
                  %v393 = vld [vmem:[%s387 + $0x10] sm:$0xff]
                  %394 = vst [vmem:[%s388 + $0x20] sm:$0xff] %v393
                  %v395 = vld [vmem:[%s387 + $0x18] sm:$0xff]
                  %396 = vst [vmem:[%s388 + $0x30] sm:$0xff] %v395
                  %v397 = vld [vmem:[%s387 + $0x20] sm:$0xff]
                  %398 = vst [vmem:[%s388 + $0x40] sm:$0xff] %v397
                  %v399 = vld [vmem:[%s387 + $0x28] sm:$0xff]
                  %400 = vst [vmem:[%s388 + $0x50] sm:$0xff] %v399
                  %v401 = vld [vmem:[%s387 + $0x30] sm:$0xff]
                  %402 = vst [vmem:[%s388 + $0x60] sm:$0xff] %v401
                  %v403 = vld [vmem:[%s387 + $0x38] sm:$0xff]
                  %404 = vst [vmem:[%s388 + $0x70] sm:$0xff] %v403
                  %v405 = vld [vmem:[%s387 + $0x40] sm:$0xff]
                  %406 = vst [vmem:[%s388 + $0x80] sm:$0xff] %v405
                  %v407 = vld [vmem:[%s387 + $0x48] sm:$0xff]
                  %408 = vst [vmem:[%s388 + $0x90] sm:$0xff] %v407
                  %v409 = vld [vmem:[%s387 + $0x50] sm:$0xff]
                  %410 = vst [vmem:[%s388 + $0xa0] sm:$0xff] %v409
                  %v411 = vld [vmem:[%s387 + $0x58] sm:$0xff]
                  %412 = vst [vmem:[%s388 + $0xb0] sm:$0xff] %v411
                  %v413 = vld [vmem:[%s387 + $0x60] sm:$0xff]
                  %414 = vst [vmem:[%s388 + $0xc0] sm:$0xff] %v413
                  %v415 = vld [vmem:[%s387 + $0x68] sm:$0xff]
                  %416 = vst [vmem:[%s388 + $0xd0] sm:$0xff] %v415
                  %v417 = vld [vmem:[%s387 + $0x70] sm:$0xff]
                  %418 = vst [vmem:[%s388 + $0xe0] sm:$0xff] %v417
                  %v419 = vld [vmem:[%s387 + $0x78] sm:$0xff]
                  %420 = vst [vmem:[%s388 + $0xf0] sm:$0xff] %v419
                $region60: #{tpu_custom_call.1} parent=54 // loop_footer
                  %s386 = sadd.s32 1, %s382
                $region61: #{tpu_custom_call.1} parent=54 // loop_footer_branch
                  %381 = sbr.rel target = $region57
                $region62: #{tpu_custom_call.1} parent=54 // loop_exit
                  _
              $region55: #{tpu_custom_call.1} parent=39 // pred_fallthru
                _
              // Predicated region
              $region63: #{tpu_custom_call.1} parent=39 // pred_check
                _
              $region64: #{tpu_custom_call.1} parent=39 // pred_check_branch
                %422 = sbr.rel target = $region66
              $region65: #{tpu_custom_call.1} parent=39 // pred_region
                _
              $region66: #{tpu_custom_call.1} parent=39 // pred_fallthru
                _
            $region40: #{tpu_custom_call.1} parent=35 // pred_fallthru
              _
            // Predicated region
            $region41: #{tpu_custom_call.1} parent=35 // pred_check
              _
            $region42: #{tpu_custom_call.1} parent=35 // pred_check_branch
              %336 = sbr.rel target = $region44
            $region43: #{tpu_custom_call.1} parent=35 // pred_region
              %s338 = ssub.s32 256, 1
              loop: start=0, step=1, limit=1
              $region45: #{tpu_custom_call.1} parent=43 // loop_pre_header
                _
              $region46: #{tpu_custom_call.1} parent=43 // loop_header
                %s340 = sphi 0, %s344
                %p341 = scmp.ge.s32.totalorder %s340, 1
                %s345 = sphi %s322, %s322
                %s346 = sphi %s330, %s330
              $region47: #{tpu_custom_call.1} parent=43 // loop_header_branch
                %343 = sbr.rel (%p341) target = $region51
              $region48: #{tpu_custom_call.1} parent=43 // loop_body
                %v347 = vld [vmem:[%s345] sm:%s338]
                %348 = vst [vmem:[%s346] sm:%s338] %v347
                %v349 = vld [vmem:[%s345 + $0x8] sm:%s338]
                %350 = vst [vmem:[%s346 + $0x10] sm:%s338] %v349
                %v351 = vld [vmem:[%s345 + $0x10] sm:%s338]
                %352 = vst [vmem:[%s346 + $0x20] sm:%s338] %v351
                %v353 = vld [vmem:[%s345 + $0x18] sm:%s338]
                %354 = vst [vmem:[%s346 + $0x30] sm:%s338] %v353
                %v355 = vld [vmem:[%s345 + $0x20] sm:%s338]
                %356 = vst [vmem:[%s346 + $0x40] sm:%s338] %v355
                %v357 = vld [vmem:[%s345 + $0x28] sm:%s338]
                %358 = vst [vmem:[%s346 + $0x50] sm:%s338] %v357
                %v359 = vld [vmem:[%s345 + $0x30] sm:%s338]
                %360 = vst [vmem:[%s346 + $0x60] sm:%s338] %v359
                %v361 = vld [vmem:[%s345 + $0x38] sm:%s338]
                %362 = vst [vmem:[%s346 + $0x70] sm:%s338] %v361
                %v363 = vld [vmem:[%s345 + $0x40] sm:%s338]
                %364 = vst [vmem:[%s346 + $0x80] sm:%s338] %v363
                %v365 = vld [vmem:[%s345 + $0x48] sm:%s338]
                %366 = vst [vmem:[%s346 + $0x90] sm:%s338] %v365
                %v367 = vld [vmem:[%s345 + $0x50] sm:%s338]
                %368 = vst [vmem:[%s346 + $0xa0] sm:%s338] %v367
                %v369 = vld [vmem:[%s345 + $0x58] sm:%s338]
                %370 = vst [vmem:[%s346 + $0xb0] sm:%s338] %v369
                %v371 = vld [vmem:[%s345 + $0x60] sm:%s338]
                %372 = vst [vmem:[%s346 + $0xc0] sm:%s338] %v371
                %v373 = vld [vmem:[%s345 + $0x68] sm:%s338]
                %374 = vst [vmem:[%s346 + $0xd0] sm:%s338] %v373
                %v375 = vld [vmem:[%s345 + $0x70] sm:%s338]
                %376 = vst [vmem:[%s346 + $0xe0] sm:%s338] %v375
                %v377 = vld [vmem:[%s345 + $0x78] sm:%s338]
                %378 = vst [vmem:[%s346 + $0xf0] sm:%s338] %v377
              $region49: #{tpu_custom_call.1} parent=43 // loop_footer
                %s344 = sadd.s32 1, %s340
              $region50: #{tpu_custom_call.1} parent=43 // loop_footer_branch
                %339 = sbr.rel target = $region46
              $region51: #{tpu_custom_call.1} parent=43 // loop_exit
                _
            $region44: #{tpu_custom_call.1} parent=35 // pred_fallthru
              _
          $region36: #{tpu_custom_call.1} parent=31 // pred_fallthru
            _
          %423 = vnop
        $region32: #{tpu_custom_call.1} parent=27 // pred_fallthru
          _
      $region28: #{tpu_custom_call.1} parent=5 // pred_fallthru
        _
      %p424 = scmp.le.s32.totalorder 2, %s8
      // Predicated region
      $region67: #{tpu_custom_call.1} parent=5 // pred_check
        %p425 = pneg %p424
      $region68: #{tpu_custom_call.1} parent=5 // pred_check_branch
        %427 = sbr.rel (%p425) target = $region70
      $region69: #{tpu_custom_call.1} parent=5 // pred_region
        %s428 = ssub.s32 %s8, 2
        // Predicated region
        $region71: #{tpu_custom_call.1} parent=69 // pred_check
          %p429 = pneg %p103
        $region72: #{tpu_custom_call.1} parent=69 // pred_check_branch
          %431 = sbr.rel (%p429) target = $region74
        $region73: #{tpu_custom_call.1} parent=69 // pred_region
          %s432 = sand.u32 %s88, 1
          %s433 = sand.u32 %s88, 1
          %s434 = smul.addr %s433, 128
          %s435 = scalar_lea.vmem [#allocation2], %s434
        $region74: #{tpu_custom_call.1} parent=69 // pred_fallthru
          _
      $region70: #{tpu_custom_call.1} parent=5 // pred_fallthru
        _
    $region6: #{tpu_custom_call.1} parent=1 // loop_footer
      %s12 = sadd.s32 1, %s8
    $region7: #{tpu_custom_call.1} parent=1 // loop_footer_branch
      %7 = sbr.rel target = $region3
    $region8: #{tpu_custom_call.1} parent=1 // loop_exit
      _

</llo_original>
